<compile_context>
chip_gen: v6e
topology: v6e:2x2x1
jax: 0.10.0
libtpu: 0.0.40
codegen_flags: <defaults>
</compile_context>

<pallas_src>
import functools

import jax
import jax.numpy as jnp
from jax.experimental import pallas as pl
from jax.experimental.pallas import tpu as pltpu

LRELU_SLOPE = 0.02


def _round_up(x, m):
    return (x + m - 1) // m * m


def _apply_activation(y, activation):
    if activation == "lrelu":
        return jnp.where(y >= 0.0, y, LRELU_SLOPE * y)
    if activation == "relu":
        return jnp.maximum(y, 0.0)
    if activation == "tanh":
        return jnp.tanh(y)
    if activation is None:
        return y
    raise ValueError(f"unsupported activation: {activation}")


def _vmem_capacity_bytes():
    try:
        return int(pltpu.get_tpu_info().vmem_capacity_bytes)
    except Exception:
        return 64 << 20  # conservative default (v7x per-TC VMEM)


# ---------------------------------------------------------------------------
# Tile plan (shared by prepare_params and dense_block) -- minimal zero-padding.
# ---------------------------------------------------------------------------
def _tile_plan(in_features, out_features):
    """Returns (f_in_p, tile_k, f_out_p, tile_n)."""
    # N (lane) tiling: lane-dense (multiple of 128) with minimal padding.
    f_out_128 = _round_up(out_features, 128)
    if f_out_128 <= 512:
        tile_n, f_out_p = f_out_128, f_out_128
    else:
        best = None
        for tn in (512, 384, 256, 128):          # descending -> larger tile wins ties
            fp = _round_up(out_features, tn)
            if best is None or fp < best[1]:
                best = (tn, fp)
        tile_n, f_out_p = best
    # K tiling: whole contraction resident when small, else minimal padding.
    if in_features <= 1024:
        tile_k, f_in_p = in_features, in_features
    else:
        best = None
        for tk in range(1024, 127, -128):        # descending -> larger tile wins ties
            fp = _round_up(in_features, tk)
            if best is None or fp < best[1]:
                best = (tk, fp)
        tile_k, f_in_p = best
    return f_in_p, tile_k, f_out_p, tile_n


# ---------------------------------------------------------------------------
# One-time parameter preparation (hoisted out of the per-call path).
# ---------------------------------------------------------------------------
def prepare_params(weight, bias, *, compute_dtype=jnp.float32):
    """weight: [F_out, F_in] (PyTorch nn.Linear layout), bias: [F_out].

    Transposes to [F_in, F_out], zero-pads to the tile plan and casts the weight
    to compute_dtype ONCE.  The bias stays float32 (it is added to the f32
    accumulator inside the kernel, so narrowing it would only lose precision).
    """
    out_features, in_features = weight.shape
    f_in_p, _, f_out_p, _ = _tile_plan(in_features, out_features)
    w = jnp.transpose(weight)  # [F_in, F_out] -- transpose once, not per call
    w = jnp.pad(w, ((0, f_in_p - in_features), (0, f_out_p - out_features)))
    b = jnp.pad(bias, (0, f_out_p - out_features)).reshape(1, f_out_p)
    return w.astype(compute_dtype), b.astype(jnp.float32)


# ---------------------------------------------------------------------------
# Kernels.
# ---------------------------------------------------------------------------
def _dense_kernel_single_k(x_ref, w_ref, b_ref, o_ref, *, activation):
    # x_ref: [block_b, tile_k], w_ref: [tile_k, tile_n], b_ref: [1, tile_n] (f32)
    x = x_ref[...]
    w = w_ref[...]
    if x.dtype != w.dtype:
        x = x.astype(w.dtype)  # in-kernel cast: VPU work hidden under the MXU
    y = jnp.dot(x, w, preferred_element_type=jnp.float32) + b_ref[...]
    y = _apply_activation(y, activation)
    # TODO(synk): norm_layer1d (BatchNorm1d/LayerNorm) branch not implemented; the
    # module is instantiated with norm=None.
    o_ref[...] = y.astype(o_ref.dtype)


def _dense_kernel_multi_k(x_ref, w_ref, b_ref, o_ref, acc_ref, *, activation):
    # grid = (batch tiles, N tiles, K tiles); K last ("arbitrary"), acc resident over K.
    k = pl.program_id(2)

    @pl.when(k == 0)
    def _():
        acc_ref[...] = jnp.zeros_like(acc_ref)

    x = x_ref[...]
    w = w_ref[...]
    if x.dtype != w.dtype:
        x = x.astype(w.dtype)
    acc_ref[...] += jnp.dot(x, w, preferred_element_type=jnp.float32)

    @pl.when(k == pl.num_programs(2) - 1)
    def _():
        y = acc_ref[...] + b_ref[...]
        o_ref[...] = _apply_activation(y, activation).astype(o_ref.dtype)


# ---------------------------------------------------------------------------
# Fused XLA path for tiny layers (kernel would be pure launch/pad/slice overhead).
# ---------------------------------------------------------------------------
def _xla_forward(x, w_prepared, b_prepared, in_features, out_features, activation):
    w = w_prepared[:in_features, :out_features]
    xc = x.astype(w.dtype) if x.dtype != w.dtype else x
    y = jnp.dot(xc, w, preferred_element_type=jnp.float32) + b_prepared[0, :out_features]
    return _apply_activation(y, activation).astype(x.dtype)


# ---------------------------------------------------------------------------
# Wrapper.
# ---------------------------------------------------------------------------
def dense_block(
    x,
    w_prepared,
    b_prepared,
    out_features,
    *,
    activation="lrelu",
    block_b=None,
    vmem_budget_bytes=None,
    keep_padded=False,
    small_problem_threshold=1 << 15,
):
    """x: [B, F_in]; w_prepared/b_prepared from prepare_params(); returns [B, F_out]
    (or the padded [b_pad, f_out_p] slab when keep_padded=True, for chained layers)."""
    B, in_features = x.shape
    f_in_p, f_out_p = w_prepared.shape
    exp_f_in_p, tile_k, exp_f_out_p, tile_n = _tile_plan(in_features, out_features)
    assert (f_in_p, f_out_p) == (exp_f_in_p, exp_f_out_p), (
        "params were not produced by prepare_params() for these feature sizes"
    )

    # Tiny layers: fused XLA dot beats any kernel launch.
    if B * in_features * out_features <= small_problem_threshold:
        return _xla_forward(x, w_prepared, b_prepared, in_features, out_features, activation)

    x_item = jnp.dtype(x.dtype).itemsize
    w_item = jnp.dtype(w_prepared.dtype).itemsize
    out_dtype = x.dtype
    out_item = jnp.dtype(out_dtype).itemsize

    vmem_cap = _vmem_capacity_bytes()
    if vmem_budget_bytes is None:
        # ~1/3 of VMEM: ~21 MiB on v7x (64 MiB/TC), ~42 MiB on v5e/v6e (128 MiB).
        vmem_budget_bytes = max(16 << 20, min(48 << 20, vmem_cap // 3))
    block_b_cap = 1024 if vmem_cap >= (100 << 20) else 512

    # Weight residency: if a full-K weight column fits comfortably, collapse the K grid
    # so the weight is DMA'd once per N tile instead of once per (batch, K) step.
    grid_k = f_in_p // tile_k
    if grid_k > 1 and 2 * f_in_p * tile_n * w_item <= vmem_budget_bytes // 2:
        tile_k = f_in_p
        grid_k = 1

    # Packed-sublane granularity for narrow dtypes (bf16 packs 2 rows per sublane).
    sub = 16 if min(x_item, w_item, out_item) < 4 else 8

    fixed = 2 * tile_k * tile_n * w_item + 2 * tile_n * 4            # W tile + bias (2-buf)
    per_row = 2 * tile_k * x_item + 2 * tile_n * out_item            # x + out tiles (2-buf)
    if grid_k > 1:
        per_row += tile_n * 4                                        # resident f32 acc

    auto_block = block_b is None
    if auto_block:
        cap_rows = max(sub, (vmem_budget_bytes - fixed) // per_row)
        cap_rows = max(sub, min(block_b_cap, (cap_rows // sub) * sub))
        b_sub = _round_up(B, sub)
        block_b = b_sub if b_sub <= cap_rows else cap_rows

    grid_n = f_out_p // tile_n
    grid_b = pl.cdiv(B, block_b)
    # v7x megacore: keep the parallel grid extent >= 2 when there is enough batch.
    if auto_block and grid_b == 1 and grid_n == 1 and block_b >= 2 * sub:
        block_b = _round_up(block_b // 2, sub)
        grid_b = pl.cdiv(B, block_b)
    b_pad = grid_b * block_b

    # Pad x only when genuinely needed (zero rows / zero K columns leave valid outputs
    # unchanged); no wrapper-side dtype cast -- the cast happens inside the kernel.
    if (b_pad, f_in_p) != (B, in_features):
        x = jnp.pad(x, ((0, b_pad - B), (0, f_in_p - in_features)))

    needed = fixed + block_b * per_row
    vmem_limit = int(min(max(needed + needed // 2, 8 << 20),
                         max(needed, (vmem_cap * 3) // 5)))

    x_bytes = b_pad * f_in_p * x_item
    w_bytes = f_in_p * f_out_p * w_item
    out_bytes = b_pad * f_out_p * out_item

    if grid_k == 1:
        kernel = functools.partial(_dense_kernel_single_k, activation=activation)
        scratch = []
        dims = ("parallel", "parallel")
        # Pick the grid order so the LARGER operand is the one streamed only once.
        cost_bn = x_bytes + (grid_b if grid_n > 1 else 1) * w_bytes   # (batch, N): x once
        cost_nb = w_bytes + (grid_n if grid_b > 1 else 1) * x_bytes   # (N, batch): W once
        if cost_bn <= cost_nb:
            grid = (grid_b, grid_n)
            x_map = lambda i, j: (i, 0)
            w_map = lambda i, j: (0, j)
            o_map = lambda i, j: (i, j)
            bytes_accessed = cost_bn + out_bytes + f_out_p * 4
        else:
            grid = (grid_n, grid_b)
            x_map = lambda j, i: (i, 0)
            w_map = lambda j, i: (0, j)
            o_map = lambda j, i: (i, j)
            bytes_accessed = cost_nb + out_bytes + f_out_p * 4
        in_specs = [
            pl.BlockSpec((block_b, tile_k), x_map),
            pl.BlockSpec((tile_k, tile_n), w_map),
            pl.BlockSpec((1, tile_n), w_map),
        ]
        out_spec = pl.BlockSpec((block_b, tile_n), o_map)
    else:
        kernel = functools.partial(_dense_kernel_multi_k, activation=activation)
        scratch = [pltpu.VMEM((block_b, tile_n), jnp.float32)]
        dims = ("parallel", "parallel", "arbitrary")
        grid = (grid_b, grid_n, grid_k)
        in_specs = [
            pl.BlockSpec((block_b, tile_k), lambda i, j, k: (i, k)),
            pl.BlockSpec((tile_k, tile_n), lambda i, j, k: (k, j)),
            pl.BlockSpec((1, tile_n), lambda i, j, k: (0, j)),
        ]
        out_spec = pl.BlockSpec((block_b, tile_n), lambda i, j, k: (i, j))
        bytes_accessed = grid_n * x_bytes + grid_b * w_bytes + out_bytes + f_out_p * 4

    cost = pl.CostEstimate(
        flops=2 * b_pad * f_in_p * f_out_p,
        transcendentals=b_pad * f_out_p if activation == "tanh" else 0,
        bytes_accessed=int(bytes_accessed),
    )

    out_padded = pl.pallas_call(
        kernel,
        out_shape=jax.ShapeDtypeStruct((b_pad, f_out_p), out_dtype),
        grid_spec=pltpu.PrefetchScalarGridSpec(
            num_scalar_prefetch=0,
            grid=grid,
            in_specs=in_specs,
            out_specs=out_spec,
            scratch_shapes=scratch,
        ),
        compiler_params=pltpu.CompilerParams(
            dimension_semantics=dims,
            vmem_limit_bytes=vmem_limit,
        ),
        cost_estimate=cost,
    )(x, w_prepared, b_prepared)

    if keep_padded or (b_pad, f_out_p) == (B, out_features):
        return out_padded
    return out_padded[:B, :out_features]


# ---------------------------------------------------------------------------
# Init mirroring the PyTorch module, and a pure-JAX reference.
# ---------------------------------------------------------------------------
def _init_dense_params(key, in_features, out_features, activation="lrelu"):
    """weight: [out_features, in_features] (torch layout), bias: zeros [out_features]."""
    kw, _ = jax.random.split(key)
    if activation in ("lrelu", "relu"):
        a = LRELU_SLOPE if activation == "lrelu" else 0.0
        gain = (2.0 / (1.0 + a * a)) ** 0.5
        bound = gain * (3.0 / in_features) ** 0.5
    else:
        gain = (5.0 / 3.0) if activation == "tanh" else 1.0
        bound = gain * (6.0 / (in_features + out_features)) ** 0.5
    weight = jax.random.uniform(
        kw, (out_features, in_features), jnp.float32, minval=-bound, maxval=bound
    )
    bias = jnp.zeros((out_features,), jnp.float32)
    return weight, bias


def _reference(x, weight, bias, activation="lrelu"):
    return _apply_activation(x @ weight.T + bias, activation)


if __name__ == "__main__":
    key = jax.random.PRNGKey(0)
    kx, kp, kx2, kp2, kx3, kp3 = jax.random.split(key, 6)
    activation = "lrelu"

    # --- small shape consistent with the module: DenseBlock(32, 64, activation='lrelu') ---
    B, F_in, F_out = 8, 32, 64
    x = jax.random.normal(kx, (B, F_in), jnp.float32)
    weight, bias = _init_dense_params(kp, F_in, F_out, activation)
    w_p, b_p = prepare_params(weight, bias, compute_dtype=jnp.float32)
    # force the Pallas kernel (small_problem_threshold=0) to validate the kernel path
    out = jax.block_until_ready(
        dense_block(x, w_p, b_p, F_out, activation=activation, small_problem_threshold=0)
    )
    ref = _reference(x, weight, bias, activation)
    assert out.shape == (B, F_out)
    assert jnp.allclose(out, ref, atol=1e-5, rtol=1e-5)
    # default dispatch routes this tiny shape to fused XLA -- must match too
    out_fb = jax.block_until_ready(dense_block(x, w_p, b_p, F_out, activation=activation))
    assert jnp.allclose(out_fb, ref, atol=1e-5, rtol=1e-5)

    # --- ragged shape: single-K path with resident weight, batch split, N padding 200->256 ---
    B2, F_in2, F_out2 = 300, 1280, 200
    x2 = jax.random.normal(kx2, (B2, F_in2), jnp.float32)
    weight2, bias2 = _init_dense_params(kp2, F_in2, F_out2, activation)
    w2_p, b2_p = prepare_params(weight2, bias2, compute_dtype=jnp.float32)
    out2 = jax.block_until_ready(dense_block(x2, w2_p, b2_p, F_out2, activation=activation))
    ref2 = _reference(x2, weight2, bias2, activation)
    assert out2.shape == (B2, F_out2)
    assert jnp.allclose(out2, ref2, atol=1e-3, rtol=1e-3)

    # --- multi-K accumulator path (forced with a small VMEM budget) ---
    B3, F_in3, F_out3 = 256, 2304, 384
    x3 = jax.random.normal(kx3, (B3, F_in3), jnp.float32)
    weight3, bias3 = _init_dense_params(kp3, F_in3, F_out3, activation)
    w3_p, b3_p = prepare_params(weight3, bias3, compute_dtype=jnp.float32)
    out3 = jax.block_until_ready(
        dense_block(x3, w3_p, b3_p, F_out3, activation=activation,
                    vmem_budget_bytes=6 * 1024 * 1024)
    )
    ref3 = _reference(x3, weight3, bias3, activation)
    assert out3.shape == (B3, F_out3)
    assert jnp.allclose(out3, ref3, atol=1e-3, rtol=1e-3)

    # --- bf16 MXU operands (x cast in-kernel), f32 accumulation, f32 bias ---
    w2_bf, b2_bf = prepare_params(weight2, bias2, compute_dtype=jnp.bfloat16)
    out_bf = jax.block_until_ready(
        dense_block(x2, w2_bf, b2_bf, F_out2, activation=activation)
    )
    ref_bf = _apply_activation(
        jnp.dot(x2.astype(jnp.bfloat16), weight2.T.astype(jnp.bfloat16),
                preferred_element_type=jnp.float32) + bias2,
        activation,
    )
    assert jnp.allclose(out_bf, ref_bf, atol=5e-2, rtol=5e-2)

    print("KERNEL_OK")
</pallas_src>

<mosaic_0001>
module attributes {stable_mosaic.version = 11 : i64} {
  func.func @_dense_kernel_single_k(%arg0: i32, %arg1: i32, %arg2: memref<8x32xf32, #tpu.memory_space<vmem>>, %arg3: memref<32x128xf32, #tpu.memory_space<vmem>>, %arg4: memref<1x128xf32, #tpu.memory_space<vmem>>, %arg5: memref<8x128xf32, #tpu.memory_space<vmem>>) attributes {dimension_semantics = [#tpu.dimension_semantics<parallel>, #tpu.dimension_semantics<parallel>], iteration_bounds = array<i64: 1, 1>, scalar_prefetch = 0 : i64, scratch_operands = 0 : i64, tpu.core_type = #tpu.core_type<tc>, window_params = [{transform_indices = @transform_0, window_bounds = array<i64: 8, 32>}, {transform_indices = @transform_1, window_bounds = array<i64: 32, 128>}, {transform_indices = @transform_2, window_bounds = array<i64: 1, 128>}, {transform_indices = @transform_3, window_bounds = array<i64: 8, 128>}]} {
    %c0 = arith.constant 0 : index
    %c0_0 = arith.constant 0 : index
    %0 = vector.load %arg2[%c0, %c0_0] : memref<8x32xf32, #tpu.memory_space<vmem>>, vector<8x32xf32>
    %c0_1 = arith.constant 0 : index
    %c0_2 = arith.constant 0 : index
    %1 = vector.load %arg3[%c0_1, %c0_2] : memref<32x128xf32, #tpu.memory_space<vmem>>, vector<32x128xf32>
    %cst = arith.constant dense<0.000000e+00> : vector<8x128xf32>
    %2 = tpu.matmul %0, %1, %cst {dimension_numbers = #tpu.dot_dimension_numbers<[1], [0], [0], [1], [0, 0, 1, 1], [], []>} : vector<8x32xf32>, vector<32x128xf32>, vector<8x128xf32> -> vector<8x128xf32>
    %c0_3 = arith.constant 0 : index
    %c0_4 = arith.constant 0 : index
    %3 = vector.load %arg4[%c0_3, %c0_4] : memref<1x128xf32, #tpu.memory_space<vmem>>, vector<1x128xf32>
    %4 = vector.broadcast %3 : vector<1x128xf32> to vector<8x128xf32>
    %5 = arith.addf %2, %4 : vector<8x128xf32>
    %cst_5 = arith.constant 0.000000e+00 : f32
    %6 = vector.broadcast %cst_5 : f32 to vector<8x128xf32>
    %7 = arith.cmpf oge, %5, %6 : vector<8x128xf32>
    %cst_6 = arith.constant 2.000000e-02 : f32
    %8 = vector.broadcast %cst_6 : f32 to vector<8x128xf32>
    %9 = arith.mulf %8, %5 : vector<8x128xf32>
    %10 = arith.select %7, %5, %9 : vector<8x128xi1>, vector<8x128xf32>
    %c0_7 = arith.constant 0 : index
    %c0_8 = arith.constant 0 : index
    %11 = vector.load %arg5[%c0_7, %c0_8] : memref<8x128xf32, #tpu.memory_space<vmem>>, vector<8x128xf32>
    tpu.vector_store %arg5[%c0_7, %c0_8], %10 {strides = array<i32>} : memref<8x128xf32, #tpu.memory_space<vmem>>, vector<8x128xf32>,
    return
  }
  func.func @transform_0(%arg0: i32, %arg1: i32) -> (i32, i32) {
    %c0_i32 = arith.constant 0 : i32
    %c0_i32_0 = arith.constant 0 : i32
    return %arg0, %c0_i32 : i32, i32
  }
  func.func @transform_1(%arg0: i32, %arg1: i32) -> (i32, i32) {
    %c0_i32 = arith.constant 0 : i32
    %c0_i32_0 = arith.constant 0 : i32
    return %c0_i32, %arg1 : i32, i32
  }
  func.func @transform_2(%arg0: i32, %arg1: i32) -> (i32, i32) {
    %c0_i32 = arith.constant 0 : i32
    %c0_i32_0 = arith.constant 0 : i32
    return %c0_i32, %arg1 : i32, i32
  }
  func.func @transform_3(%arg0: i32, %arg1: i32) -> (i32, i32) {
    %c0_i32 = arith.constant 0 : i32
    return %arg0, %arg1 : i32, i32
  }
}

</mosaic_0001>

<llo_original>
// kernel: tpu_custom_call.1
$region0: #{tpu_custom_call.1}
  #allocation0 [shape = 'u32[]', space=smem, size = 0x4, offset = 0x4, fixed_abs, tag = 'smem constant byte address 0x4 - core index']
  #allocation1 [shape = 'u32[144,128]{1,0:T(1,128)}', space=vmem, size = 0x12000, scoped, tag = 'internal scratch']
  %s0 = inlined_call_operand.hbm [shape: f32[8,32], index: 0, kind: input, shape index: {}]
  %s1 = inlined_call_operand.hbm [shape: f32[32,128], index: 1, kind: input, shape index: {}]
  %s2 = inlined_call_operand.vmem [shape: f32[1,128], index: 2, kind: input, shape index: {}]
  %s3 = inlined_call_operand.hbm [shape: f32[8,128], index: 3, kind: output, shape index: {}]
  %s4 = sld [smem:[#allocation0]]
  $region30: #{tpu_custom_call.1} parent=0
    _
  %s6 = ssub.s32 1, %s4
  %s7 = scalar_select 0, %s6, %s4
  $region1: #{tpu_custom_call.1} parent=0
    #allocation2 [shape = 'u8[4096]{0}', space=vmem, size = 0x1000, scoped, tag = 'input window, operand 0, single buffered']
    #allocation3 [shape = 's32[1]{0}', space=sflag, size = 0x4, scoped, tag = 'scoped memory for tpu_custom_call.1']
    #allocation4 [shape = 's32[1]{0}', space=sflag, size = 0x4, scoped, tag = 'scoped memory for tpu_custom_call.1']
    #allocation5 [shape = 'u8[16384]{0}', space=vmem, size = 0x4000, scoped, tag = 'input window, operand 1, single buffered']
    #allocation6 [shape = 's32[1]{0}', space=sflag, size = 0x4, scoped, tag = 'scoped memory for tpu_custom_call.1']
    #allocation7 [shape = 'u8[4096]{0}', space=vmem, size = 0x1000, scoped, tag = 'output window, operand 0, single buffered']
    %8 = vsyncpa [#allocation3], 0
    %9 = vsyncpa [#allocation6], 0
    %10 = vsyncpa [#allocation4], 0
    // Predicated region
    $region2: #{tpu_custom_call.1} parent=1 // pred_check
      _
    $region3: #{tpu_custom_call.1} parent=1 // pred_check_branch
      %12 = sbr.rel (0) target = $region5
    $region4: #{tpu_custom_call.1} parent=1 // pred_region
      %s14 = ssub.s32 128, 128
      %15 = vsyncadd [#allocation3], %s14
      %s17 = sshll.u32 [#allocation2], 4
      %s18 = int_to_ptr.vmem [resolvable:$true] %s17
      %20 = dma.hbm_to_vmem [thread:$0]  %s0, 128, %s18, [#allocation3]
    $region5: #{tpu_custom_call.1} parent=1 // pred_fallthru
      _
    // Predicated region
    $region6: #{tpu_custom_call.1} parent=1 // pred_check
      _
    $region7: #{tpu_custom_call.1} parent=1 // pred_check_branch
      %22 = sbr.rel (0) target = $region9
    $region8: #{tpu_custom_call.1} parent=1 // pred_region
      %s24 = ssub.s32 512, 512
      %25 = vsyncadd [#allocation6], %s24
      %s26 = sshll.u32 [#allocation5], 4
      %s27 = int_to_ptr.vmem [resolvable:$true] %s26
      %32 = dma.hbm_to_vmem [thread:$0]  %s1, 512, %s27, [#allocation6], 128, 128, 8
    $region9: #{tpu_custom_call.1} parent=1 // pred_fallthru
      _
    // Predicated region
    $region10: #{tpu_custom_call.1} parent=1 // pred_check
      _
    $region11: #{tpu_custom_call.1} parent=1 // pred_check_branch
      %34 = sbr.rel (0) target = $region13
    $region12: #{tpu_custom_call.1} parent=1 // pred_region
      _
    $region13: #{tpu_custom_call.1} parent=1 // pred_fallthru
      _
    // Predicated region
    $region14: #{tpu_custom_call.1} parent=1 // pred_check
      _
    $region15: #{tpu_custom_call.1} parent=1 // pred_check_branch
      %36 = sbr.rel (0) target = $region17
    $region16: #{tpu_custom_call.1} parent=1 // pred_region
      %37 = dma.done [#allocation3], 128
    $region17: #{tpu_custom_call.1} parent=1 // pred_fallthru
      _
    // Predicated region
    $region18: #{tpu_custom_call.1} parent=1 // pred_check
      _
    $region19: #{tpu_custom_call.1} parent=1 // pred_check_branch
      %39 = sbr.rel (0) target = $region21
    $region20: #{tpu_custom_call.1} parent=1 // pred_region
      %40 = dma.done [#allocation6], 512
    $region21: #{tpu_custom_call.1} parent=1 // pred_fallthru
      _
    %v41 = vld [vmem:[#allocation2] sm:$0xff]
    %v42 = vld [vmem:[#allocation5] sm:$0xff]
    %v43 = vld [vmem:[#allocation5 + $0x8] sm:$0xff]
    %v44 = vld [vmem:[#allocation5 + $0x10] sm:$0xff]
    %v45 = vld [vmem:[#allocation5 + $0x18] sm:$0xff]
    %v46 = vld [vmem:[%s2] sm:$0x1]
    %v48 = vlaneseq
    %v49 = vshrl.u32 %v48, 7
    %v50 = vsub.s32 0, %v49
    %v51 = vrot.slane %v46, %v50
    %vm53 = vcmask 261120
    %v55 = vsel %vm53, %v41, 0
    %57 = vmatprep.subr.mxu0 0.0
    %58 = vmatpush1.msra.mxu0 0.0
    %59 = vmatprep.subr.mxu0 0.0
    %60 = vmatpush1.msra.mxu0 0.0
    %61 = vmatprep.subr.mxu0 0.0
    %62 = vmatpush1.msra.mxu0 0.0
    %63 = vmatprep.subr.mxu0 0.0
    %64 = vmatpush1.msra.mxu0 0.0
    %65 = vmatprep.subr.mxu0 0.0
    %66 = vmatpush1.msra.mxu0 0.0
    %67 = vmatprep.subr.mxu0 0.0
    %68 = vmatpush1.msra.mxu0 0.0
    %69 = vmatprep.subr.mxu0 0.0
    %70 = vmatpush1.msra.mxu0 0.0
    %71 = vmatprep.subr.mxu0 0.0
    %72 = vmatpush1.msra.mxu0 0.0
    %73 = vmatprep.subr.mxu0 0.0
    %74 = vmatpush1.msra.mxu0 0.0
    %75 = vmatprep.subr.mxu0 0.0
    %76 = vmatpush1.msra.mxu0 0.0
    %77 = vmatprep.subr.mxu0 0.0
    %78 = vmatpush1.msra.mxu0 0.0
    %79 = vmatprep.subr.mxu0 0.0
    %80 = vmatpush1.msra.mxu0 0.0
    %81 = vmatprep.subr.mxu0 0.0
    %82 = vmatpush1.msra.mxu0 %v45
    %83 = vmatprep.subr.mxu0 0.0
    %84 = vmatpush1.msra.mxu0 %v44
    %85 = vmatprep.subr.mxu0 0.0
    %86 = vmatpush1.msra.mxu0 %v43
    %87 = vmatprep.subr.mxu0 0.0
    %88 = vmatpush1.msra.mxu0 %v42
    %89 = vmatprep.subr.mxu0 0.0
    %90 = vmatpush2.msra.mxu0 0.0
    %91 = vmatprep.subr.mxu0 0.0
    %92 = vmatpush2.msra.mxu0 0.0
    %93 = vmatprep.subr.mxu0 0.0
    %94 = vmatpush2.msra.mxu0 0.0
    %95 = vmatprep.subr.mxu0 0.0
    %96 = vmatpush2.msra.mxu0 0.0
    %97 = vmatprep.subr.mxu0 0.0
    %98 = vmatpush2.msra.mxu0 0.0
    %99 = vmatprep.subr.mxu0 0.0
    %100 = vmatpush2.msra.mxu0 0.0
    %101 = vmatprep.subr.mxu0 0.0
    %102 = vmatpush2.msra.mxu0 0.0
    %103 = vmatprep.subr.mxu0 0.0
    %104 = vmatpush2.msra.mxu0 0.0
    %105 = vmatprep.subr.mxu0 0.0
    %106 = vmatpush2.msra.mxu0 0.0
    %107 = vmatprep.subr.mxu0 0.0
    %108 = vmatpush2.msra.mxu0 0.0
    %109 = vmatprep.subr.mxu0 0.0
    %110 = vmatpush2.msra.mxu0 0.0
    %111 = vmatprep.subr.mxu0 0.0
    %112 = vmatpush2.msra.mxu0 0.0
    %113 = vmatprep.subr.mxu0 0.0
    %114 = vmatpush2.msra.mxu0 0.0
    %115 = vmatprep.subr.mxu0 0.0
    %116 = vmatpush2.msra.mxu0 0.0
    %117 = vmatprep.subr.mxu0 0.0
    %118 = vmatpush2.msra.mxu0 0.0
    %119 = vmatprep.subr.mxu0 0.0
    %120 = vmatpush2.msra.mxu0 0.0
    %121 = vmatprep.mubr.f32.mxu0 0.0
    %122 = vmatmul.mubr.f32.gmra.mxu0 %v55
    %v123 = vpop.f32.mrf.mxu0
    %v124 = vadd.f32 %v51, %v123
    %v125 = vpop.f32.mrf.mxu0
    %126 = vdwg.mxu0
    %vm127 = vcmp.ge.f32.partialorder %v124, 0.0
    %v128 = vmul.f32 %v124, 0.02
    %v129 = vsel %vm127, %v124, %v128
    %130 = vst [vmem:[#allocation7] sm:$0xff] %v129
    // Predicated region
    $region22: #{tpu_custom_call.1} parent=1 // pred_check
      _
    $region23: #{tpu_custom_call.1} parent=1 // pred_check_branch
      %132 = sbr.rel (0) target = $region25
    $region24: #{tpu_custom_call.1} parent=1 // pred_region
      %s134 = ssub.s32 128, 128
      %135 = vsyncadd [#allocation4], %s134
      %s137 = sshll.u32 [#allocation7], 4
      %s138 = int_to_ptr.vmem [resolvable:$true] %s137
      %140 = dma.vmem_to_hbm [thread:$0]  %s138, 128, %s3, [#allocation4]
    $region25: #{tpu_custom_call.1} parent=1 // pred_fallthru
      _
    // Predicated region
    $region26: #{tpu_custom_call.1} parent=1 // pred_check
      _
    $region27: #{tpu_custom_call.1} parent=1 // pred_check_branch
      %142 = sbr.rel (0) target = $region29
    $region28: #{tpu_custom_call.1} parent=1 // pred_region
      %143 = dma.done [#allocation4], 128
    $region29: #{tpu_custom_call.1} parent=1 // pred_fallthru
      _
    %144 = vsyncpa [#allocation3], 1
    %145 = vsyncpa [#allocation6], 1
    %146 = vsyncpa [#allocation4], 1

</llo_original>
